<compile_context>
chip_gen: v5e
topology: v5e:2x2
jax: 0.10.0
libtpu: 0.0.40
codegen_flags: <defaults>
</compile_context>

<pallas_src>
import jax
import jax.numpy as jnp
from jax.experimental import pallas as pl
from jax.experimental.pallas import tpu as pltpu


def _round_up(x, m):
    return (x + m - 1) // m * m


# ----------------------------------------------------------------------------
# Fused kernel: conv1 -> ReLU -> conv2 -> ReLU -> fc1 -> ReLU -> fc2
# ----------------------------------------------------------------------------
def _chess_cnn_kernel(p1_ref, w1_ref, b1_ref, w2_ref, b2_ref,
                      w3_ref, b3_ref, w4_ref, b4_ref, o_ref,
                      s2_ref, s3_ref):
    # p1_ref : (16*TB, 36) bf16  conv1 im2col patches, rows ordered (p, q, b)
    #          p = position in conv2's 2x2 window, q = conv2 output position
    # w1_ref : (36, 64)   bf16   b1_ref : (1, 64)  f32
    # w2_ref : (256, 128) bf16   b2_ref : (1, 128) f32   rows = p*64 + c_in
    # w3_ref : (512, 128) bf16   b3_ref : (1, 128) f32   rows = q*128 + c_in
    # w4_ref : (1, 128)   f32    b4_ref : (1, 1)   f32
    # o_ref  : (TB, 1)    f32
    # s2_ref : (4*TB, 256) bf16 VMEM scratch -- conv2 LHS
    # s3_ref : (TB, 512)   bf16 VMEM scratch -- fc1  LHS
    tb = o_ref.shape[0]

    # conv1: ONE 16*TB-row MXU matmul; bias + ReLU applied once.
    h1 = jnp.dot(p1_ref[...], w1_ref[...], preferred_element_type=jnp.float32)
    h1 = jnp.maximum(h1 + b1_ref[...], 0.0).astype(jnp.bfloat16)      # (16TB, 64)

    # Scatter per-p slabs into lane blocks of the conv2 LHS (no XLU transpose;
    # sublane offsets are multiples of 4*TB, i.e. 64+, so slices stay aligned).
    for p in range(4):
        s2_ref[:, p * 64:(p + 1) * 64] = h1[p * 4 * tb:(p + 1) * 4 * tb, :]

    # conv2: ONE (4TB, 256)@(256, 128) matmul -- window reduction folded into K.
    h2 = jnp.dot(s2_ref[...], w2_ref[...], preferred_element_type=jnp.float32)
    h2 = jnp.maximum(h2 + b2_ref[...], 0.0).astype(jnp.bfloat16)      # (4TB, 128)

    # Scatter per-q slabs into 128-aligned lane blocks of the fc1 LHS.
    for q in range(4):
        s3_ref[:, q * 128:(q + 1) * 128] = h2[q * tb:(q + 1) * tb, :]

    # fc1: ONE (TB, 512)@(512, 128) matmul.
    h3 = jnp.dot(s3_ref[...], w3_ref[...], preferred_element_type=jnp.float32)
    h3 = jnp.maximum(h3 + b3_ref[...], 0.0)                           # (TB, 128) f32

    # fc2 (128 -> 1): VPU multiply + XLU lane reduction (avoids 1-lane matmul).
    out = jnp.sum(h3 * w4_ref[...], axis=-1, keepdims=True) + b4_ref[...]
    o_ref[...] = out.astype(o_ref.dtype)


# ----------------------------------------------------------------------------
# Parameters (deterministic synthetic init, PyTorch shapes) + kernel layout.
# ----------------------------------------------------------------------------
def init_raw_params(key):
    k = jax.random.split(key, 8)
    w1 = jax.random.normal(k[0], (64, 9, 2, 2), jnp.float32) / jnp.sqrt(9.0 * 4.0)
    b1 = jax.random.normal(k[1], (64,), jnp.float32) * 0.02
    w2 = jax.random.normal(k[2], (128, 64, 2, 2), jnp.float32) / jnp.sqrt(64.0 * 4.0)
    b2 = jax.random.normal(k[3], (128,), jnp.float32) * 0.02
    w3 = jax.random.normal(k[4], (128, 512), jnp.float32) / jnp.sqrt(512.0)
    b3 = jax.random.normal(k[5], (128,), jnp.float32) * 0.02
    w4 = jax.random.normal(k[6], (1, 128), jnp.float32) / jnp.sqrt(128.0)
    b4 = jax.random.normal(k[7], (1,), jnp.float32) * 0.02
    return (w1, b1, w2, b2, w3, b3, w4, b4)


def to_kernel_params(raw):
    """One-time layout plumbing: bf16 MXU weights, all permutations absorbed."""
    w1, b1, w2, b2, w3, b3, w4, b4 = raw
    return {
        # conv1: (36, 64), rows c*4 + kh*2 + kw (PyTorch OIHW flatten)
        "w1": w1.reshape(64, 36).T.astype(jnp.bfloat16),
        "b1": b1.reshape(1, 64).astype(jnp.float32),
        # conv2 pre-stacked over window position p: (256, 128), row = p*64 + c_in
        "w2": w2.reshape(128, 64, 4).transpose(2, 1, 0)
                .reshape(256, 128).astype(jnp.bfloat16),
        "b2": b2.reshape(1, 128).astype(jnp.float32),
        # fc1 pre-stacked over spatial position q with the NCHW-flatten
        # permutation absorbed: (512, 128), row = q*128 + c_in
        "w3": w3.reshape(128, 128, 4).transpose(2, 1, 0)
                .reshape(512, 128).astype(jnp.bfloat16),
        "b3": b3.reshape(1, 128).astype(jnp.float32),
        # fc2 kept f32 (VPU reduction epilogue)
        "w4": w4.reshape(1, 128).astype(jnp.float32),
        "b4": b4.reshape(1, 1).astype(jnp.float32),
    }


# ----------------------------------------------------------------------------
# Forward pass (single Pallas call, batch-tiled grid).
# ----------------------------------------------------------------------------
def chess_cnn_forward(params, board_pos, *, batch_tile=128):
    # board_pos: (N, 9, 8, 8) NCHW float32
    N = board_pos.shape[0]
    # Batch tile: multiple of 16 (bf16 sublane packing) -> all in-kernel sublane
    # slices stay tile-aligned. Sized well under v7x's 64 MiB VMEM.
    TB = min(batch_tile, _round_up(N, 16))
    N_pad = _round_up(N, TB)
    G = N_pad // TB

    xp = jnp.pad(board_pos, ((0, N_pad - N), (0, 0), (0, 0), (0, 0)))

    # conv1 im2col patches, rows grouped (tile, p, q, b), cols c*4 + kh*2 + kw.
    #   input h = 4*oh2 + 2*dh + kh,  w = 4*ow2 + 2*dw + kw,
    #   p = dh*2 + dw (pos in conv2 2x2 window), q = oh2*2 + ow2 (conv2 output).
    # TODO(synk): at very large (mem-bound) batch, stream board_pos into the
    # kernel directly and build the 16 patch slabs in-VMEM to avoid this
    # wrapper-side p1 HBM round trip.
    x = xp.reshape(G, TB, 9, 2, 2, 2, 2, 2, 2)        # (t,b,c,oh2,dh,kh,ow2,dw,kw)
    p1 = (x.transpose(0, 4, 7, 3, 6, 1, 2, 5, 8)      # (t,dh,dw,oh2,ow2,b,c,kh,kw)
           .reshape(G * 16 * TB, 36)
           .astype(jnp.bfloat16))

    flops = 2 * N_pad * (16 * 36 * 64 + 4 * 256 * 128 + 512 * 128 + 128)
    bytes_accessed = (16 * N_pad * 36 * 2                              # p1 (bf16)
                      + (36 * 64 + 256 * 128 + 512 * 128) * 2          # bf16 weights
                      + (64 + 128 + 128 + 128 + 1 + 1) * 4             # f32 bias / w4
                      + N_pad * 4)                                     # output

    def const(shape):
        return pl.BlockSpec(shape, lambda t: (0,) * len(shape))        # resident

    out = pl.pallas_call(
        _chess_cnn_kernel,
        out_shape=jax.ShapeDtypeStruct((N_pad, 1), jnp.float32),
        grid_spec=pltpu.PrefetchScalarGridSpec(
            num_scalar_prefetch=0,
            grid=(G,),
            in_specs=[
                pl.BlockSpec((16 * TB, 36), lambda t: (t, 0)),  # p1 (batch-tiled)
                const((36, 64)),      # w1
                const((1, 64)),       # b1
                const((256, 128)),    # w2 (stacked over p)
                const((1, 128)),      # b2
                const((512, 128)),    # w3 (stacked over q)
                const((1, 128)),      # b3
                const((1, 128)),      # w4
                const((1, 1)),        # b4
            ],
            out_specs=pl.BlockSpec((TB, 1), lambda t: (t, 0)),
            scratch_shapes=[
                pltpu.VMEM((4 * TB, 256), jnp.bfloat16),   # conv2 LHS scratch
                pltpu.VMEM((TB, 512), jnp.bfloat16),       # fc1  LHS scratch
            ],
        ),
        compiler_params=pltpu.CompilerParams(
            dimension_semantics=("parallel",),             # shard batch on 2 TCs (v7x)
            vmem_limit_bytes=32 * 1024 * 1024,             # safe on v5e/v6e/v7x
        ),
        cost_estimate=pl.CostEstimate(flops=flops, transcendentals=0,
                                      bytes_accessed=bytes_accessed),
    )(p1, params["w1"], params["b1"], params["w2"], params["b2"],
      params["w3"], params["b3"], params["w4"], params["b4"])

    return out[:N]                                         # (N, 1)


# ----------------------------------------------------------------------------
# Pure-JAX reference (PyTorch semantics, f32 HIGHEST precision).
# ----------------------------------------------------------------------------
def reference_forward(raw, board_pos):
    w1, b1, w2, b2, w3, b3, w4, b4 = raw
    dn = ("NCHW", "OIHW", "NCHW")
    y = jax.lax.conv_general_dilated(board_pos, w1, (2, 2), "VALID",
                                     dimension_numbers=dn,
                                     precision=jax.lax.Precision.HIGHEST)
    y = jax.nn.relu(y + b1[None, :, None, None])
    y = jax.lax.conv_general_dilated(y, w2, (2, 2), "VALID",
                                     dimension_numbers=dn,
                                     precision=jax.lax.Precision.HIGHEST)
    y = jax.nn.relu(y + b2[None, :, None, None])
    y = y.reshape(y.shape[0], -1)                          # NCHW flatten -> (N, 512)
    y = jax.nn.relu(jnp.dot(y, w3.T, precision=jax.lax.Precision.HIGHEST) + b3)
    return jnp.dot(y, w4.T, precision=jax.lax.Precision.HIGHEST) + b4


if __name__ == "__main__":
    key = jax.random.PRNGKey(0)
    k_param, k_x = jax.random.split(key)

    raw = init_raw_params(k_param)
    params = to_kernel_params(raw)

    batch = 4
    board_pos = jax.random.normal(k_x, (batch, 9, 8, 8), jnp.float32)

    fwd = jax.jit(chess_cnn_forward)
    out = jax.block_until_ready(fwd(params, board_pos))
    ref = jax.block_until_ready(reference_forward(raw, board_pos))

    assert out.shape == (batch, 1), out.shape
    # Tolerance covers bf16 MXU operands vs. the f32-HIGHEST reference.
    assert jnp.allclose(out, ref, rtol=3e-2, atol=3e-2), (out, ref)

    print("KERNEL_OK")
</pallas_src>

<mosaic_0001>
module attributes {stable_mosaic.version = 11 : i64} {
  func.func @_chess_cnn_kernel(%arg0: i32, %arg1: memref<256x36xbf16, #tpu.memory_space<vmem>>, %arg2: memref<36x64xbf16, #tpu.memory_space<vmem>>, %arg3: memref<1x64xf32, #tpu.memory_space<vmem>>, %arg4: memref<256x128xbf16, #tpu.memory_space<vmem>>, %arg5: memref<1x128xf32, #tpu.memory_space<vmem>>, %arg6: memref<512x128xbf16, #tpu.memory_space<vmem>>, %arg7: memref<1x128xf32, #tpu.memory_space<vmem>>, %arg8: memref<1x128xf32, #tpu.memory_space<vmem>>, %arg9: memref<1x1xf32, #tpu.memory_space<vmem>>, %arg10: memref<16x1xf32, #tpu.memory_space<vmem>>, %arg11: memref<64x256xbf16, #tpu.memory_space<vmem>>, %arg12: memref<16x512xbf16, #tpu.memory_space<vmem>>) attributes {dimension_semantics = [#tpu.dimension_semantics<parallel>], iteration_bounds = array<i64: 1>, scalar_prefetch = 0 : i64, scratch_operands = 2 : i64, tpu.core_type = #tpu.core_type<tc>, window_params = [{transform_indices = @transform_0, window_bounds = array<i64: 256, 36>}, {pipeline_mode = #tpu.pipeline_mode<synchronous>, transform_indices = @transform_1, window_bounds = array<i64: 36, 64>}, {pipeline_mode = #tpu.pipeline_mode<synchronous>, transform_indices = @transform_2, window_bounds = array<i64: 1, 64>}, {pipeline_mode = #tpu.pipeline_mode<synchronous>, transform_indices = @transform_3, window_bounds = array<i64: 256, 128>}, {pipeline_mode = #tpu.pipeline_mode<synchronous>, transform_indices = @transform_4, window_bounds = array<i64: 1, 128>}, {pipeline_mode = #tpu.pipeline_mode<synchronous>, transform_indices = @transform_5, window_bounds = array<i64: 512, 128>}, {pipeline_mode = #tpu.pipeline_mode<synchronous>, transform_indices = @transform_6, window_bounds = array<i64: 1, 128>}, {pipeline_mode = #tpu.pipeline_mode<synchronous>, transform_indices = @transform_7, window_bounds = array<i64: 1, 128>}, {pipeline_mode = #tpu.pipeline_mode<synchronous>, transform_indices = @transform_8, window_bounds = array<i64: 1, 1>}, {transform_indices = @transform_9, window_bounds = array<i64: 16, 1>}]} {
    %c0 = arith.constant 0 : index
    %c0_0 = arith.constant 0 : index
    %0 = vector.load %arg1[%c0, %c0_0] : memref<256x36xbf16, #tpu.memory_space<vmem>>, vector<256x36xbf16>
    %c0_1 = arith.constant 0 : index
    %c0_2 = arith.constant 0 : index
    %1 = vector.load %arg2[%c0_1, %c0_2] : memref<36x64xbf16, #tpu.memory_space<vmem>>, vector<36x64xbf16>
    %cst = arith.constant dense<0.000000e+00> : vector<256x64xf32>
    %2 = tpu.matmul %0, %1, %cst {dimension_numbers = #tpu.dot_dimension_numbers<[1], [0], [0], [1], [0, 0, 1, 1], [], []>} : vector<256x36xbf16>, vector<36x64xbf16>, vector<256x64xf32> -> vector<256x64xf32>
    %c0_3 = arith.constant 0 : index
    %c0_4 = arith.constant 0 : index
    %3 = vector.load %arg3[%c0_3, %c0_4] : memref<1x64xf32, #tpu.memory_space<vmem>>, vector<1x64xf32>
    %4 = vector.broadcast %3 : vector<1x64xf32> to vector<256x64xf32>
    %5 = arith.addf %2, %4 : vector<256x64xf32>
    %cst_5 = arith.constant 0.000000e+00 : f32
    %6 = vector.broadcast %cst_5 : f32 to vector<256x64xf32>
    %7 = arith.maximumf %5, %6 : vector<256x64xf32>
    %8 = arith.truncf %7 : vector<256x64xf32> to vector<256x64xbf16>
    %9 = vector.extract_strided_slice %8 {offsets = [0, 0], sizes = [64, 64], strides = [1, 1]} : vector<256x64xbf16> to vector<64x64xbf16>
    %c0_6 = arith.constant 0 : index
    %c0_7 = arith.constant 0 : index
    %10 = vector.load %arg11[%c0_6, %c0_7] : memref<64x256xbf16, #tpu.memory_space<vmem>>, vector<64x64xbf16>
    tpu.vector_store %arg11[%c0_6, %c0_7], %9 {strides = array<i32>} : memref<64x256xbf16, #tpu.memory_space<vmem>>, vector<64x64xbf16>,
    %11 = vector.extract_strided_slice %8 {offsets = [64, 0], sizes = [64, 64], strides = [1, 1]} : vector<256x64xbf16> to vector<64x64xbf16>
    %c0_8 = arith.constant 0 : index
    %c64 = arith.constant 64 : index
    %12 = vector.load %arg11[%c0_8, %c64] : memref<64x256xbf16, #tpu.memory_space<vmem>>, vector<64x64xbf16>
    tpu.vector_store %arg11[%c0_8, %c64], %11 {strides = array<i32>} : memref<64x256xbf16, #tpu.memory_space<vmem>>, vector<64x64xbf16>,
    %13 = vector.extract_strided_slice %8 {offsets = [128, 0], sizes = [64, 64], strides = [1, 1]} : vector<256x64xbf16> to vector<64x64xbf16>
    %c0_9 = arith.constant 0 : index
    %c128 = arith.constant 128 : index
    %14 = vector.load %arg11[%c0_9, %c128] : memref<64x256xbf16, #tpu.memory_space<vmem>>, vector<64x64xbf16>
    tpu.vector_store %arg11[%c0_9, %c128], %13 {strides = array<i32>} : memref<64x256xbf16, #tpu.memory_space<vmem>>, vector<64x64xbf16>,
    %15 = vector.extract_strided_slice %8 {offsets = [192, 0], sizes = [64, 64], strides = [1, 1]} : vector<256x64xbf16> to vector<64x64xbf16>
    %c0_10 = arith.constant 0 : index
    %c192 = arith.constant 192 : index
    %16 = vector.load %arg11[%c0_10, %c192] : memref<64x256xbf16, #tpu.memory_space<vmem>>, vector<64x64xbf16>
    tpu.vector_store %arg11[%c0_10, %c192], %15 {strides = array<i32>} : memref<64x256xbf16, #tpu.memory_space<vmem>>, vector<64x64xbf16>,
    %c0_11 = arith.constant 0 : index
    %c0_12 = arith.constant 0 : index
    %17 = vector.load %arg11[%c0_11, %c0_12] : memref<64x256xbf16, #tpu.memory_space<vmem>>, vector<64x256xbf16>
    %c0_13 = arith.constant 0 : index
    %c0_14 = arith.constant 0 : index
    %18 = vector.load %arg4[%c0_13, %c0_14] : memref<256x128xbf16, #tpu.memory_space<vmem>>, vector<256x128xbf16>
    %cst_15 = arith.constant dense<0.000000e+00> : vector<64x128xf32>
    %19 = tpu.matmul %17, %18, %cst_15 {dimension_numbers = #tpu.dot_dimension_numbers<[1], [0], [0], [1], [0, 0, 1, 1], [], []>} : vector<64x256xbf16>, vector<256x128xbf16>, vector<64x128xf32> -> vector<64x128xf32>
    %c0_16 = arith.constant 0 : index
    %c0_17 = arith.constant 0 : index
    %20 = vector.load %arg5[%c0_16, %c0_17] : memref<1x128xf32, #tpu.memory_space<vmem>>, vector<1x128xf32>
    %21 = vector.broadcast %20 : vector<1x128xf32> to vector<64x128xf32>
    %22 = arith.addf %19, %21 : vector<64x128xf32>
    %cst_18 = arith.constant 0.000000e+00 : f32
    %23 = vector.broadcast %cst_18 : f32 to vector<64x128xf32>
    %24 = arith.maximumf %22, %23 : vector<64x128xf32>
    %25 = arith.truncf %24 : vector<64x128xf32> to vector<64x128xbf16>
    %26 = vector.extract_strided_slice %25 {offsets = [0, 0], sizes = [16, 128], strides = [1, 1]} : vector<64x128xbf16> to vector<16x128xbf16>
    %c0_19 = arith.constant 0 : index
    %c0_20 = arith.constant 0 : index
    %27 = vector.load %arg12[%c0_19, %c0_20] : memref<16x512xbf16, #tpu.memory_space<vmem>>, vector<16x128xbf16>
    tpu.vector_store %arg12[%c0_19, %c0_20], %26 {strides = array<i32>} : memref<16x512xbf16, #tpu.memory_space<vmem>>, vector<16x128xbf16>,
    %28 = vector.extract_strided_slice %25 {offsets = [16, 0], sizes = [16, 128], strides = [1, 1]} : vector<64x128xbf16> to vector<16x128xbf16>
    %c0_21 = arith.constant 0 : index
    %c128_22 = arith.constant 128 : index
    %29 = vector.load %arg12[%c0_21, %c128_22] : memref<16x512xbf16, #tpu.memory_space<vmem>>, vector<16x128xbf16>
    tpu.vector_store %arg12[%c0_21, %c128_22], %28 {strides = array<i32>} : memref<16x512xbf16, #tpu.memory_space<vmem>>, vector<16x128xbf16>,
    %30 = vector.extract_strided_slice %25 {offsets = [32, 0], sizes = [16, 128], strides = [1, 1]} : vector<64x128xbf16> to vector<16x128xbf16>
    %c0_23 = arith.constant 0 : index
    %c256 = arith.constant 256 : index
    %31 = vector.load %arg12[%c0_23, %c256] : memref<16x512xbf16, #tpu.memory_space<vmem>>, vector<16x128xbf16>
    tpu.vector_store %arg12[%c0_23, %c256], %30 {strides = array<i32>} : memref<16x512xbf16, #tpu.memory_space<vmem>>, vector<16x128xbf16>,
    %32 = vector.extract_strided_slice %25 {offsets = [48, 0], sizes = [16, 128], strides = [1, 1]} : vector<64x128xbf16> to vector<16x128xbf16>
    %c0_24 = arith.constant 0 : index
    %c384 = arith.constant 384 : index
    %33 = vector.load %arg12[%c0_24, %c384] : memref<16x512xbf16, #tpu.memory_space<vmem>>, vector<16x128xbf16>
    tpu.vector_store %arg12[%c0_24, %c384], %32 {strides = array<i32>} : memref<16x512xbf16, #tpu.memory_space<vmem>>, vector<16x128xbf16>,
    %c0_25 = arith.constant 0 : index
    %c0_26 = arith.constant 0 : index
    %34 = vector.load %arg12[%c0_25, %c0_26] : memref<16x512xbf16, #tpu.memory_space<vmem>>, vector<16x512xbf16>
    %c0_27 = arith.constant 0 : index
    %c0_28 = arith.constant 0 : index
    %35 = vector.load %arg6[%c0_27, %c0_28] : memref<512x128xbf16, #tpu.memory_space<vmem>>, vector<512x128xbf16>
    %cst_29 = arith.constant dense<0.000000e+00> : vector<16x128xf32>
    %36 = tpu.matmul %34, %35, %cst_29 {dimension_numbers = #tpu.dot_dimension_numbers<[1], [0], [0], [1], [0, 0, 1, 1], [], []>} : vector<16x512xbf16>, vector<512x128xbf16>, vector<16x128xf32> -> vector<16x128xf32>
    %c0_30 = arith.constant 0 : index
    %c0_31 = arith.constant 0 : index
    %37 = vector.load %arg7[%c0_30, %c0_31] : memref<1x128xf32, #tpu.memory_space<vmem>>, vector<1x128xf32>
    %38 = vector.broadcast %37 : vector<1x128xf32> to vector<16x128xf32>
    %39 = arith.addf %36, %38 : vector<16x128xf32>
    %cst_32 = arith.constant 0.000000e+00 : f32
    %40 = vector.broadcast %cst_32 : f32 to vector<16x128xf32>
    %41 = arith.maximumf %39, %40 : vector<16x128xf32>
    %c0_33 = arith.constant 0 : index
    %c0_34 = arith.constant 0 : index
    %42 = vector.load %arg8[%c0_33, %c0_34] : memref<1x128xf32, #tpu.memory_space<vmem>>, vector<1x128xf32>
    %43 = vector.broadcast %42 : vector<1x128xf32> to vector<16x128xf32>
    %44 = arith.mulf %41, %43 : vector<16x128xf32>
    %cst_35 = arith.constant dense<0.000000e+00> : vector<16xf32>
    %45 = vector.multi_reduction <add>, %44, %cst_35 [1] : vector<16x128xf32> to vector<16xf32>
    %46 = vector.shape_cast %45 : vector<16xf32> to vector<16x1xf32>
    %c0_36 = arith.constant 0 : index
    %c0_37 = arith.constant 0 : index
    %47 = vector.load %arg9[%c0_36, %c0_37] : memref<1x1xf32, #tpu.memory_space<vmem>>, vector<1x1xf32>
    %48 = vector.broadcast %47 : vector<1x1xf32> to vector<16x1xf32>
    %49 = arith.addf %46, %48 : vector<16x1xf32>
    %c0_38 = arith.constant 0 : index
    %c0_39 = arith.constant 0 : index
    %50 = vector.load %arg10[%c0_38, %c0_39] : memref<16x1xf32, #tpu.memory_space<vmem>>, vector<16x1xf32>
    tpu.vector_store %arg10[%c0_38, %c0_39], %49 {strides = array<i32>} : memref<16x1xf32, #tpu.memory_space<vmem>>, vector<16x1xf32>,
    return
  }
  func.func @transform_0(%arg0: i32) -> (i32, i32) {
    %c0_i32 = arith.constant 0 : i32
    %c0_i32_0 = arith.constant 0 : i32
    return %arg0, %c0_i32 : i32, i32
  }
  func.func @transform_1(%arg0: i32) -> (i32, i32) {
    %c0_i32 = arith.constant 0 : i32
    %c0_i32_0 = arith.constant 0 : i32
    %c0_i32_1 = arith.constant 0 : i32
    return %c0_i32, %c0_i32_0 : i32, i32
  }
  func.func @transform_2(%arg0: i32) -> (i32, i32) {
    %c0_i32 = arith.constant 0 : i32
    %c0_i32_0 = arith.constant 0 : i32
    %c0_i32_1 = arith.constant 0 : i32
    return %c0_i32, %c0_i32_0 : i32, i32
  }
  func.func @transform_3(%arg0: i32) -> (i32, i32) {
    %c0_i32 = arith.constant 0 : i32
    %c0_i32_0 = arith.constant 0 : i32
    %c0_i32_1 = arith.constant 0 : i32
    return %c0_i32, %c0_i32_0 : i32, i32
  }
  func.func @transform_4(%arg0: i32) -> (i32, i32) {
    %c0_i32 = arith.constant 0 : i32
    %c0_i32_0 = arith.constant 0 : i32
    %c0_i32_1 = arith.constant 0 : i32
    return %c0_i32, %c0_i32_0 : i32, i32
  }
  func.func @transform_5(%arg0: i32) -> (i32, i32) {
    %c0_i32 = arith.constant 0 : i32
    %c0_i32_0 = arith.constant 0 : i32
    %c0_i32_1 = arith.constant 0 : i32
    return %c0_i32, %c0_i32_0 : i32, i32
  }
  func.func @transform_6(%arg0: i32) -> (i32, i32) {
    %c0_i32 = arith.constant 0 : i32
    %c0_i32_0 = arith.constant 0 : i32
    %c0_i32_1 = arith.constant 0 : i32
    return %c0_i32, %c0_i32_0 : i32, i32
  }
  func.func @transform_7(%arg0: i32) -> (i32, i32) {
    %c0_i32 = arith.constant 0 : i32
    %c0_i32_0 = arith.constant 0 : i32
    %c0_i32_1 = arith.constant 0 : i32
    return %c0_i32, %c0_i32_0 : i32, i32
  }
  func.func @transform_8(%arg0: i32) -> (i32, i32) {
    %c0_i32 = arith.constant 0 : i32
    %c0_i32_0 = arith.constant 0 : i32
    %c0_i32_1 = arith.constant 0 : i32
    return %c0_i32, %c0_i32_0 : i32, i32
  }
  func.func @transform_9(%arg0: i32) -> (i32, i32) {
    %c0_i32 = arith.constant 0 : i32
    %c0_i32_0 = arith.constant 0 : i32
    return %arg0, %c0_i32 : i32, i32
  }
}

</mosaic_0001>

<llo_original>
// kernel: chess_cnn_forward.1
$region0: #{chess_cnn_forward.1}
  #allocation0 [shape = 'u32[]', space=smem, size = 0x4, offset = 0x4, fixed_abs, tag = 'smem constant byte address 0x4 - core index']
  #allocation1 [shape = 'u32[72,128]{1,0:T(1,128)}', space=vmem, size = 0x9000, scoped, tag = 'internal scratch']
  #allocation2 [shape = 'bf16[64,256]{1,0:T(8,128)(2,1)}', space=vmem, size = 0x8000, scoped, tag = 'scratch operand']
  #allocation3 [shape = 'bf16[16,512]{1,0:T(8,128)(2,1)}', space=vmem, size = 0x4000, scoped, tag = 'scratch operand']
  #allocation4 [shape = 'f32[1,1]{1,0:T(1,128)S(1)}', space=vmem, size = 0x200, scoped, tag = 'scoped memory for chess_cnn_forward.1']
  %s0 = inlined_call_operand.vmem [shape: bf16[256,36], index: 0, kind: input, shape index: {}]
  %s1 = inlined_call_operand.vmem [shape: bf16[36,64], index: 1, kind: input, shape index: {}]
  %s2 = inlined_call_operand.vmem [shape: f32[1,64], index: 2, kind: input, shape index: {}]
  %s3 = inlined_call_operand.vmem [shape: bf16[256,128], index: 3, kind: input, shape index: {}]
  %s4 = inlined_call_operand.vmem [shape: f32[1,128], index: 4, kind: input, shape index: {}]
  %s5 = inlined_call_operand.vmem [shape: bf16[512,128], index: 5, kind: input, shape index: {}]
  %s6 = inlined_call_operand.vmem [shape: f32[1,128], index: 6, kind: input, shape index: {}]
  %s7 = inlined_call_operand.vmem [shape: f32[1,128], index: 7, kind: input, shape index: {}]
  %s8 = inlined_call_operand.<no memory space> [shape: f32[1,1], index: 8, kind: input, shape index: {}]
  %s9 = inlined_call_operand.vmem [shape: f32[16,1], index: 9, kind: output, shape index: {}]
  %s10 = sld [smem:[#allocation0]]
  $region46: #{chess_cnn_forward.1} parent=0
    _
  %s12 = ssub.s32 1, %s10
  %s13 = scalar_select 0, %s12, %s10
  %v14 = vstv %s8
  %15 = vst [vmem:[#allocation4] sm:$0x1] %v14
  // Predicated region
  $region2: #{chess_cnn_forward.1} parent=0 // pred_check
    _
  $region3: #{chess_cnn_forward.1} parent=0 // pred_check_branch
    %17 = sbr.rel (0) target = $region5
  $region4: #{chess_cnn_forward.1} parent=0 // pred_region
    _
  $region5: #{chess_cnn_forward.1} parent=0 // pred_fallthru
    _
  // Predicated region
  $region6: #{chess_cnn_forward.1} parent=0 // pred_check
    _
  $region7: #{chess_cnn_forward.1} parent=0 // pred_check_branch
    %19 = sbr.rel (0) target = $region9
  $region8: #{chess_cnn_forward.1} parent=0 // pred_region
    _
  $region9: #{chess_cnn_forward.1} parent=0 // pred_fallthru
    _
  // Predicated region
  $region10: #{chess_cnn_forward.1} parent=0 // pred_check
    _
  $region11: #{chess_cnn_forward.1} parent=0 // pred_check_branch
    %21 = sbr.rel (0) target = $region13
  $region12: #{chess_cnn_forward.1} parent=0 // pred_region
    _
  $region13: #{chess_cnn_forward.1} parent=0 // pred_fallthru
    _
  // Predicated region
  $region14: #{chess_cnn_forward.1} parent=0 // pred_check
    _
  $region15: #{chess_cnn_forward.1} parent=0 // pred_check_branch
    %23 = sbr.rel (0) target = $region17
  $region16: #{chess_cnn_forward.1} parent=0 // pred_region
    _
  $region17: #{chess_cnn_forward.1} parent=0 // pred_fallthru
    _
  // Predicated region
  $region18: #{chess_cnn_forward.1} parent=0 // pred_check
    _
  $region19: #{chess_cnn_forward.1} parent=0 // pred_check_branch
    %25 = sbr.rel (0) target = $region21
  $region20: #{chess_cnn_forward.1} parent=0 // pred_region
    _
  $region21: #{chess_cnn_forward.1} parent=0 // pred_fallthru
    _
  // Predicated region
  $region22: #{chess_cnn_forward.1} parent=0 // pred_check
    _
  $region23: #{chess_cnn_forward.1} parent=0 // pred_check_branch
    %27 = sbr.rel (0) target = $region25
  $region24: #{chess_cnn_forward.1} parent=0 // pred_region
    _
  $region25: #{chess_cnn_forward.1} parent=0 // pred_fallthru
    _
  // Predicated region
  $region26: #{chess_cnn_forward.1} parent=0 // pred_check
    _
  $region27: #{chess_cnn_forward.1} parent=0 // pred_check_branch
    %29 = sbr.rel (0) target = $region29
  $region28: #{chess_cnn_forward.1} parent=0 // pred_region
    _
  $region29: #{chess_cnn_forward.1} parent=0 // pred_fallthru
    _
  // Predicated region
  $region30: #{chess_cnn_forward.1} parent=0 // pred_check
    _
  $region31: #{chess_cnn_forward.1} parent=0 // pred_check_branch
    %31 = sbr.rel (0) target = $region33
  $region32: #{chess_cnn_forward.1} parent=0 // pred_region
    _
  $region33: #{chess_cnn_forward.1} parent=0 // pred_fallthru
    _
  // Predicated region
  $region34: #{chess_cnn_forward.1} parent=0 // pred_check
    _
  $region35: #{chess_cnn_forward.1} parent=0 // pred_check_branch
    %33 = sbr.rel (0) target = $region37
  $region36: #{chess_cnn_forward.1} parent=0 // pred_region
    _
  $region37: #{chess_cnn_forward.1} parent=0 // pred_fallthru
    _
  %v35 = vld [vmem:[%s0] sm:$0xf]
  %v36 = vld [vmem:[%s0 + $0x4] sm:$0xf]
  %v37 = vld [vmem:[%s0 + $0x8] sm:$0xf]
  %v38 = vld [vmem:[%s0 + $0xc] sm:$0xf]
  %v39 = vld [vmem:[%s0 + $0x10] sm:$0xf]
  %v40 = vld [vmem:[%s0 + $0x14] sm:$0xf]
  %v41 = vld [vmem:[%s0 + $0x18] sm:$0xf]
  %v42 = vld [vmem:[%s0 + $0x1c] sm:$0xf]
  %v43 = vld [vmem:[%s0 + $0x20] sm:$0xf]
  %v44 = vld [vmem:[%s0 + $0x24] sm:$0xf]
  %v45 = vld [vmem:[%s0 + $0x28] sm:$0xf]
  %v46 = vld [vmem:[%s0 + $0x2c] sm:$0xf]
  %v47 = vld [vmem:[%s0 + $0x30] sm:$0xf]
  %v48 = vld [vmem:[%s0 + $0x34] sm:$0xf]
  %v49 = vld [vmem:[%s0 + $0x38] sm:$0xf]
  %v50 = vld [vmem:[%s0 + $0x3c] sm:$0xf]
  %v51 = vld [vmem:[%s0 + $0x40] sm:$0xf]
  %v52 = vld [vmem:[%s0 + $0x44] sm:$0xf]
  %v53 = vld [vmem:[%s0 + $0x48] sm:$0xf]
  %v54 = vld [vmem:[%s0 + $0x4c] sm:$0xf]
  %v55 = vld [vmem:[%s0 + $0x50] sm:$0xf]
  %v56 = vld [vmem:[%s0 + $0x54] sm:$0xf]
  %v57 = vld [vmem:[%s0 + $0x58] sm:$0xf]
  %v58 = vld [vmem:[%s0 + $0x5c] sm:$0xf]
  %v59 = vld [vmem:[%s0 + $0x60] sm:$0xf]
  %v60 = vld [vmem:[%s0 + $0x64] sm:$0xf]
  %v61 = vld [vmem:[%s0 + $0x68] sm:$0xf]
  %v62 = vld [vmem:[%s0 + $0x6c] sm:$0xf]
  %v63 = vld [vmem:[%s0 + $0x70] sm:$0xf]
  %v64 = vld [vmem:[%s0 + $0x74] sm:$0xf]
  %v65 = vld [vmem:[%s0 + $0x78] sm:$0xf]
  %v66 = vld [vmem:[%s0 + $0x7c] sm:$0xf]
  %v67 = vld [vmem:[%s1] sm:$0xf]
  %v68 = vld [vmem:[%s1 + $0x4] sm:$0xf]
  %v69 = vld [vmem:[%s1 + $0x8] sm:$0xf]
  %v70 = vld [vmem:[%s1 + $0xc] sm:$0xf]
  %v71 = vld [vmem:[%s1 + $0x10] sm:$0x3]
  %v72 = vld [vmem:[%s2] sm:$0x1]
  %v74 = vperm.slane %v72, 0
  %v108 = vunpack.c.l.b16 %v35
  %v109 = vunpack.c.l.b16 %v36
  %v110 = vunpack.c.l.b16 %v37
  %v111 = vunpack.c.l.b16 %v38
  %v112 = vunpack.c.l.b16 %v39
  %v113 = vunpack.c.l.b16 %v40
  %v114 = vunpack.c.l.b16 %v41
  %v115 = vunpack.c.l.b16 %v42
  %v116 = vunpack.c.l.b16 %v43
  %v117 = vunpack.c.l.b16 %v44
  %v118 = vunpack.c.l.b16 %v45
  %v119 = vunpack.c.l.b16 %v46
  %v120 = vunpack.c.l.b16 %v47
  %v121 = vunpack.c.l.b16 %v48
  %v122 = vunpack.c.l.b16 %v49
  %v123 = vunpack.c.l.b16 %v50
  %v124 = vunpack.c.l.b16 %v51
  %v125 = vunpack.c.l.b16 %v52
  %v126 = vunpack.c.l.b16 %v53
  %v127 = vunpack.c.l.b16 %v54
  %v128 = vunpack.c.l.b16 %v55
  %v129 = vunpack.c.l.b16 %v56
  %v130 = vunpack.c.l.b16 %v57
  %v131 = vunpack.c.l.b16 %v58
  %v132 = vunpack.c.l.b16 %v59
  %v133 = vunpack.c.l.b16 %v60
  %v134 = vunpack.c.l.b16 %v61
  %v135 = vunpack.c.l.b16 %v62
  %v136 = vunpack.c.l.b16 %v63
  %v137 = vunpack.c.l.b16 %v64
  %v138 = vunpack.c.l.b16 %v65
  %v139 = vunpack.c.l.b16 %v66
  %v140 = vpack.c.b16 %v109, %v108
  %v141 = vpack.c.b16 %v111, %v110
  %v142 = vpack.c.b16 %v113, %v112
  %v143 = vpack.c.b16 %v115, %v114
  %v144 = vpack.c.b16 %v117, %v116
  %v145 = vpack.c.b16 %v119, %v118
  %v146 = vpack.c.b16 %v121, %v120
  %v147 = vpack.c.b16 %v123, %v122
  %v148 = vpack.c.b16 %v125, %v124
  %v149 = vpack.c.b16 %v127, %v126
  %v150 = vpack.c.b16 %v129, %v128
  %v151 = vpack.c.b16 %v131, %v130
  %v152 = vpack.c.b16 %v133, %v132
  %v153 = vpack.c.b16 %v135, %v134
  %v154 = vpack.c.b16 %v137, %v136
  %v155 = vpack.c.b16 %v139, %v138
  %v161 = vunpack.c.l.b16 %v67
  %v162 = vunpack.c.l.b16 %v68
  %v163 = vunpack.c.l.b16 %v69
  %v164 = vunpack.c.l.b16 %v70
  %v165 = vunpack.c.l.b16 %v71
  %v166 = vpack.c.b16 %v162, %v161
  %v167 = vpack.c.b16 %v164, %v163
  %v168 = vpack.c.b16 %v165, %v165
  %vm171 = vcmask 293888
  %v173 = vsel %vm171, %v140, 0
  %v176 = vsel %vm171, %v141, 0
  %v179 = vsel %vm171, %v142, 0
  %v182 = vsel %vm171, %v143, 0
  %v185 = vsel %vm171, %v144, 0
  %v188 = vsel %vm171, %v145, 0
  %v191 = vsel %vm171, %v146, 0
  %v194 = vsel %vm171, %v147, 0
  %v197 = vsel %vm171, %v148, 0
  %v200 = vsel %vm171, %v149, 0
  %v203 = vsel %vm171, %v150, 0
  %v206 = vsel %vm171, %v151, 0
  %v209 = vsel %vm171, %v152, 0
  %v212 = vsel %vm171, %v153, 0
  %v215 = vsel %vm171, %v154, 0
  %v218 = vsel %vm171, %v155, 0
  %vm220 = vcmask 1041408
  %v222 = vsel %vm220, %v168, 0
  %224 = vmatpush.bf16.msra.mxu0 0
  %225 = vmatpush.bf16.msra.mxu0 0
  %226 = vmatpush.bf16.msra.mxu0 0
  %227 = vmatpush.bf16.msra.mxu0 0
  %228 = vmatpush.bf16.msra.mxu0 0
  %229 = vmatpush.bf16.msra.mxu0 %v222
  %230 = vmatpush.bf16.msra.mxu0 %v167
  %231 = vmatpush.bf16.msra.mxu0 %v166
  %232 = vmatmul.bf16.gmra.mxu0 %v173
  %v233 = vpop.f32.mrf.mxu0
  %v234 = vadd.f32 %v74, %v233
  %v235 = vpop.f32.mrf.mxu0
  %v236 = vadd.f32 %v74, %v235
  %237 = vmatmul.bf16.gmra.mxu0 %v176
  %v238 = vpop.f32.mrf.mxu0
  %v239 = vadd.f32 %v74, %v238
  %v240 = vpop.f32.mrf.mxu0
  %v241 = vadd.f32 %v74, %v240
  %242 = vmatmul.bf16.gmra.mxu0 %v179
  %v243 = vpop.f32.mrf.mxu0
  %v244 = vadd.f32 %v74, %v243
  %v245 = vpop.f32.mrf.mxu0
  %v246 = vadd.f32 %v74, %v245
  %247 = vmatmul.bf16.gmra.mxu0 %v182
  %v248 = vpop.f32.mrf.mxu0
  %v249 = vadd.f32 %v74, %v248
  %v250 = vpop.f32.mrf.mxu0
  %v251 = vadd.f32 %v74, %v250
  %252 = vmatmul.bf16.gmra.mxu0 %v185
  %v253 = vpop.f32.mrf.mxu0
  %v254 = vadd.f32 %v74, %v253
  %v255 = vpop.f32.mrf.mxu0
  %v256 = vadd.f32 %v74, %v255
  %257 = vmatmul.bf16.gmra.mxu0 %v188
  %v258 = vpop.f32.mrf.mxu0
  %v259 = vadd.f32 %v74, %v258
  %v260 = vpop.f32.mrf.mxu0
  %v261 = vadd.f32 %v74, %v260
  %262 = vmatmul.bf16.gmra.mxu0 %v191
  %v263 = vpop.f32.mrf.mxu0
  %v264 = vadd.f32 %v74, %v263
  %v265 = vpop.f32.mrf.mxu0
  %v266 = vadd.f32 %v74, %v265
  %267 = vmatmul.bf16.gmra.mxu0 %v194
  %v268 = vpop.f32.mrf.mxu0
  %v269 = vadd.f32 %v74, %v268
  %v270 = vpop.f32.mrf.mxu0
  %v271 = vadd.f32 %v74, %v270
  %272 = vmatmul.bf16.gmra.mxu0 %v197
  %v273 = vpop.f32.mrf.mxu0
  %v274 = vadd.f32 %v74, %v273
  %v275 = vpop.f32.mrf.mxu0
  %v276 = vadd.f32 %v74, %v275
  %277 = vmatmul.bf16.gmra.mxu0 %v200
  %v278 = vpop.f32.mrf.mxu0
  %v279 = vadd.f32 %v74, %v278
  %v280 = vpop.f32.mrf.mxu0
  %v281 = vadd.f32 %v74, %v280
  %282 = vmatmul.bf16.gmra.mxu0 %v203
  %v283 = vpop.f32.mrf.mxu0
  %v284 = vadd.f32 %v74, %v283
  %v285 = vpop.f32.mrf.mxu0
  %v286 = vadd.f32 %v74, %v285
  %287 = vmatmul.bf16.gmra.mxu0 %v206
  %v288 = vpop.f32.mrf.mxu0
  %v289 = vadd.f32 %v74, %v288
  %v290 = vpop.f32.mrf.mxu0
  %v291 = vadd.f32 %v74, %v290
  %292 = vmatmul.bf16.gmra.mxu0 %v209
  %v293 = vpop.f32.mrf.mxu0
  %v294 = vadd.f32 %v74, %v293
  %v295 = vpop.f32.mrf.mxu0
  %v296 = vadd.f32 %v74, %v295
  %297 = vmatmul.bf16.gmra.mxu0 %v212
  %v298 = vpop.f32.mrf.mxu0
  %v299 = vadd.f32 %v74, %v298
  %v300 = vpop.f32.mrf.mxu0
  %v301 = vadd.f32 %v74, %v300
  %302 = vmatmul.bf16.gmra.mxu0 %v215
  %v303 = vpop.f32.mrf.mxu0
  %v304 = vadd.f32 %v74, %v303
  %v305 = vpop.f32.mrf.mxu0
  %v306 = vadd.f32 %v74, %v305
  %307 = vmatmul.bf16.gmra.mxu0 %v218
  %v308 = vpop.f32.mrf.mxu0
  %v309 = vadd.f32 %v74, %v308
  %v310 = vpop.f32.mrf.mxu0
  %v311 = vadd.f32 %v74, %v310
  %312 = vdwg.mxu0
  %v313 = vmax.f32 %v234, 0.0
  %v314 = vmax.f32 %v236, 0.0
  %v315 = vmax.f32 %v239, 0.0
  %v316 = vmax.f32 %v241, 0.0
  %v317 = vmax.f32 %v244, 0.0
  %v318 = vmax.f32 %v246, 0.0
  %v319 = vmax.f32 %v249, 0.0
  %v320 = vmax.f32 %v251, 0.0
  %v321 = vmax.f32 %v254, 0.0
  %v322 = vmax.f32 %v256, 0.0
  %v323 = vmax.f32 %v259, 0.0
  %v324 = vmax.f32 %v261, 0.0
  %v325 = vmax.f32 %v264, 0.0
  %v326 = vmax.f32 %v266, 0.0
  %v327 = vmax.f32 %v269, 0.0
  %v328 = vmax.f32 %v271, 0.0
  %v329 = vmax.f32 %v274, 0.0
  %v330 = vmax.f32 %v276, 0.0
  %v331 = vmax.f32 %v279, 0.0
  %v332 = vmax.f32 %v281, 0.0
  %v333 = vmax.f32 %v284, 0.0
  %v334 = vmax.f32 %v286, 0.0
  %v335 = vmax.f32 %v289, 0.0
  %v336 = vmax.f32 %v291, 0.0
  %v337 = vmax.f32 %v294, 0.0
  %v338 = vmax.f32 %v296, 0.0
  %v339 = vmax.f32 %v299, 0.0
  %v340 = vmax.f32 %v301, 0.0
  %v341 = vmax.f32 %v304, 0.0
  %v342 = vmax.f32 %v306, 0.0
  %v343 = vmax.f32 %v309, 0.0
  %v344 = vmax.f32 %v311, 0.0
  %v345 = vpack.c.bf16 %v313, %v313
  %v346 = vpack.c.bf16 %v314, %v314
  %v347 = vpack.c.bf16 %v315, %v315
  %v348 = vpack.c.bf16 %v316, %v316
  %v349 = vpack.c.bf16 %v317, %v317
  %v350 = vpack.c.bf16 %v318, %v318
  %v351 = vpack.c.bf16 %v319, %v319
  %v352 = vpack.c.bf16 %v320, %v320
  %v353 = vpack.c.bf16 %v321, %v321
  %v354 = vpack.c.bf16 %v322, %v322
  %v355 = vpack.c.bf16 %v323, %v323
  %v356 = vpack.c.bf16 %v324, %v324
  %v357 = vpack.c.bf16 %v325, %v325
  %v358 = vpack.c.bf16 %v326, %v326
  %v359 = vpack.c.bf16 %v327, %v327
  %v360 = vpack.c.bf16 %v328, %v328
  %v361 = vpack.c.bf16 %v329, %v329
  %v362 = vpack.c.bf16 %v330, %v330
  %v363 = vpack.c.bf16 %v331, %v331
  %v364 = vpack.c.bf16 %v332, %v332
  %v365 = vpack.c.bf16 %v333, %v333
  %v366 = vpack.c.bf16 %v334, %v334
  %v367 = vpack.c.bf16 %v335, %v335
  %v368 = vpack.c.bf16 %v336, %v336
  %v369 = vpack.c.bf16 %v337, %v337
  %v370 = vpack.c.bf16 %v338, %v338
  %v371 = vpack.c.bf16 %v339, %v339
  %v372 = vpack.c.bf16 %v340, %v340
  %v373 = vpack.c.bf16 %v341, %v341
  %v374 = vpack.c.bf16 %v342, %v342
  %v375 = vpack.c.bf16 %v343, %v343
  %v376 = vpack.c.bf16 %v344, %v344
  %vm377 = vcmask 519168
  %378 = vst.msk [vmem:[#allocation2] sm:$0xf] %vm377, %v345
  %379 = vst.msk [vmem:[#allocation2 + $0x8] sm:$0xf] %vm377, %v346
  %380 = vst.msk [vmem:[#allocation2 + $0x10] sm:$0xf] %vm377, %v347
  %381 = vst.msk [vmem:[#allocation2 + $0x18] sm:$0xf] %vm377, %v348
  %382 = vst.msk [vmem:[#allocation2 + $0x20] sm:$0xf] %vm377, %v349
  %383 = vst.msk [vmem:[#allocation2 + $0x28] sm:$0xf] %vm377, %v350
  %384 = vst.msk [vmem:[#allocation2 + $0x30] sm:$0xf] %vm377, %v351
  %385 = vst.msk [vmem:[#allocation2 + $0x38] sm:$0xf] %vm377, %v352
  %394 = vrot.lane.b32.xlu0 %v353, 64
  %v395 = vpop.permute.xlu0 %394
  %396 = vrot.lane.b32.xlu0 %v354, 64
  %v397 = vpop.permute.xlu0 %396
  %398 = vrot.lane.b32.xlu0 %v355, 64
  %v399 = vpop.permute.xlu0 %398
  %400 = vrot.lane.b32.xlu0 %v356, 64
  %v401 = vpop.permute.xlu0 %400
  %402 = vrot.lane.b32.xlu0 %v357, 64
  %v403 = vpop.permute.xlu0 %402
  %404 = vrot.lane.b32.xlu0 %v358, 64
  %v405 = vpop.permute.xlu0 %404
  %406 = vrot.lane.b32.xlu0 %v359, 64
  %v407 = vpop.permute.xlu0 %406
  %408 = vrot.lane.b32.xlu0 %v360, 64
  %v409 = vpop.permute.xlu0 %408
  %vm418 = vcmask 1043968
  %419 = vst.msk [vmem:[#allocation2] sm:$0xf] %vm418, %v395
  %420 = vst.msk [vmem:[#allocation2 + $0x8] sm:$0xf] %vm418, %v397
  %421 = vst.msk [vmem:[#allocation2 + $0x10] sm:$0xf] %vm418, %v399
  %422 = vst.msk [vmem:[#allocation2 + $0x18] sm:$0xf] %vm418, %v401
  %423 = vst.msk [vmem:[#allocation2 + $0x20] sm:$0xf] %vm418, %v403
  %424 = vst.msk [vmem:[#allocation2 + $0x28] sm:$0xf] %vm418, %v405
  %425 = vst.msk [vmem:[#allocation2 + $0x30] sm:$0xf] %vm418, %v407
  %426 = vst.msk [vmem:[#allocation2 + $0x38] sm:$0xf] %vm418, %v409
  %427 = vst.msk [vmem:[#allocation2 + $0x4] sm:$0xf] %vm377, %v361
  %428 = vst.msk [vmem:[#allocation2 + $0xc] sm:$0xf] %vm377, %v362
  %429 = vst.msk [vmem:[#allocation2 + $0x14] sm:$0xf] %vm377, %v363
  %430 = vst.msk [vmem:[#allocation2 + $0x1c] sm:$0xf] %vm377, %v364
  %431 = vst.msk [vmem:[#allocation2 + $0x24] sm:$0xf] %vm377, %v365
  %432 = vst.msk [vmem:[#allocation2 + $0x2c] sm:$0xf] %vm377, %v366
  %433 = vst.msk [vmem:[#allocation2 + $0x34] sm:$0xf] %vm377, %v367
  %434 = vst.msk [vmem:[#allocation2 + $0x3c] sm:$0xf] %vm377, %v368
  %443 = vrot.lane.b32.xlu0 %v369, 64
  %v444 = vpop.permute.xlu0 %443
  %445 = vrot.lane.b32.xlu0 %v370, 64
  %v446 = vpop.permute.xlu0 %445
  %447 = vrot.lane.b32.xlu0 %v371, 64
  %v448 = vpop.permute.xlu0 %447
  %449 = vrot.lane.b32.xlu0 %v372, 64
  %v450 = vpop.permute.xlu0 %449
  %451 = vrot.lane.b32.xlu0 %v373, 64
  %v452 = vpop.permute.xlu0 %451
  %453 = vrot.lane.b32.xlu0 %v374, 64
  %v454 = vpop.permute.xlu0 %453
  %455 = vrot.lane.b32.xlu0 %v375, 64
  %v456 = vpop.permute.xlu0 %455
  %457 = vrot.lane.b32.xlu0 %v376, 64
  %v458 = vpop.permute.xlu0 %457
  %467 = vst.msk [vmem:[#allocation2 + $0x4] sm:$0xf] %vm418, %v444
  %468 = vst.msk [vmem:[#allocation2 + $0xc] sm:$0xf] %vm418, %v446
  %469 = vst.msk [vmem:[#allocation2 + $0x14] sm:$0xf] %vm418, %v448
  %470 = vst.msk [vmem:[#allocation2 + $0x1c] sm:$0xf] %vm418, %v450
  %471 = vst.msk [vmem:[#allocation2 + $0x24] sm:$0xf] %vm418, %v452
  %472 = vst.msk [vmem:[#allocation2 + $0x2c] sm:$0xf] %vm418, %v454
  %473 = vst.msk [vmem:[#allocation2 + $0x34] sm:$0xf] %vm418, %v456
  %474 = vst.msk [vmem:[#allocation2 + $0x3c] sm:$0xf] %vm418, %v458
  %v475 = vld [vmem:[#allocation2] sm:$0xff]
  %v476 = vld [vmem:[#allocation2 + $0x8] sm:$0xff]
  %v477 = vld [vmem:[#allocation2 + $0x10] sm:$0xff]
  %v478 = vld [vmem:[#allocation2 + $0x18] sm:$0xff]
  %v479 = vld [vmem:[#allocation2 + $0x20] sm:$0xff]
  %v480 = vld [vmem:[#allocation2 + $0x28] sm:$0xff]
  %v481 = vld [vmem:[#allocation2 + $0x30] sm:$0xff]
  %v482 = vld [vmem:[#allocation2 + $0x38] sm:$0xff]
  %v483 = vld [vmem:[%s3] sm:$0xf]
  %v484 = vld [vmem:[%s3 + $0x4] sm:$0xf]
  %v485 = vld [vmem:[%s3 + $0x8] sm:$0xf]
  %v486 = vld [vmem:[%s3 + $0xc] sm:$0xf]
  %v487 = vld [vmem:[%s3 + $0x10] sm:$0xf]
  %v488 = vld [vmem:[%s3 + $0x14] sm:$0xf]
  %v489 = vld [vmem:[%s3 + $0x18] sm:$0xf]
  %v490 = vld [vmem:[%s3 + $0x1c] sm:$0xf]
  %v491 = vld [vmem:[%s3 + $0x20] sm:$0xf]
  %v492 = vld [vmem:[%s3 + $0x24] sm:$0xf]
  %v493 = vld [vmem:[%s3 + $0x28] sm:$0xf]
  %v494 = vld [vmem:[%s3 + $0x2c] sm:$0xf]
  %v495 = vld [vmem:[%s3 + $0x30] sm:$0xf]
  %v496 = vld [vmem:[%s3 + $0x34] sm:$0xf]
  %v497 = vld [vmem:[%s3 + $0x38] sm:$0xf]
  %v498 = vld [vmem:[%s3 + $0x3c] sm:$0xf]
  %v499 = vld [vmem:[%s3 + $0x40] sm:$0xf]
  %v500 = vld [vmem:[%s3 + $0x44] sm:$0xf]
  %v501 = vld [vmem:[%s3 + $0x48] sm:$0xf]
  %v502 = vld [vmem:[%s3 + $0x4c] sm:$0xf]
  %v503 = vld [vmem:[%s3 + $0x50] sm:$0xf]
  %v504 = vld [vmem:[%s3 + $0x54] sm:$0xf]
  %v505 = vld [vmem:[%s3 + $0x58] sm:$0xf]
  %v506 = vld [vmem:[%s3 + $0x5c] sm:$0xf]
  %v507 = vld [vmem:[%s3 + $0x60] sm:$0xf]
  %v508 = vld [vmem:[%s3 + $0x64] sm:$0xf]
  %v509 = vld [vmem:[%s3 + $0x68] sm:$0xf]
  %v510 = vld [vmem:[%s3 + $0x6c] sm:$0xf]
  %v511 = vld [vmem:[%s3 + $0x70] sm:$0xf]
  %v512 = vld [vmem:[%s3 + $0x74] sm:$0xf]
  %v513 = vld [vmem:[%s3 + $0x78] sm:$0xf]
  %v514 = vld [vmem:[%s3 + $0x7c] sm:$0xf]
  %v515 = vld [vmem:[%s4] sm:$0x1]
  %v517 = vperm.slane %v515, 0
  %v527 = vunpack.c.l.b16 %v475
  %v528 = vunpack.c.h.b16 %v475
  %v529 = vunpack.c.l.b16 %v476
  %v530 = vunpack.c.h.b16 %v476
  %v531 = vunpack.c.l.b16 %v477
  %v532 = vunpack.c.h.b16 %v477
  %v533 = vunpack.c.l.b16 %v478
  %v534 = vunpack.c.h.b16 %v478
  %v535 = vunpack.c.l.b16 %v479
  %v536 = vunpack.c.h.b16 %v479
  %v537 = vunpack.c.l.b16 %v480
  %v538 = vunpack.c.h.b16 %v480
  %v539 = vunpack.c.l.b16 %v481
  %v540 = vunpack.c.h.b16 %v481
  %v541 = vunpack.c.l.b16 %v482
  %v542 = vunpack.c.h.b16 %v482
  %v543 = vpack.c.b16 %v529, %v527
  %v544 = vpack.c.b16 %v530, %v528
  %v545 = vpack.c.b16 %v533, %v531
  %v546 = vpack.c.b16 %v534, %v532
  %v547 = vpack.c.b16 %v537, %v535
  %v548 = vpack.c.b16 %v538, %v536
  %v549 = vpack.c.b16 %v541, %v539
  %v550 = vpack.c.b16 %v542, %v540
  %v591 = vunpack.c.l.b16 %v483
  %v592 = vunpack.c.l.b16 %v484
  %v593 = vunpack.c.l.b16 %v485
  %v594 = vunpack.c.l.b16 %v486
  %v595 = vunpack.c.l.b16 %v487
  %v596 = vunpack.c.l.b16 %v488
  %v597 = vunpack.c.l.b16 %v489
  %v598 = vunpack.c.l.b16 %v490
  %v599 = vunpack.c.l.b16 %v491
  %v600 = vunpack.c.l.b16 %v492
  %v601 = vunpack.c.l.b16 %v493
  %v602 = vunpack.c.l.b16 %v494
  %v603 = vunpack.c.l.b16 %v495
  %v604 = vunpack.c.l.b16 %v496
  %v605 = vunpack.c.l.b16 %v497
  %v606 = vunpack.c.l.b16 %v498
  %v607 = vunpack.c.l.b16 %v499
  %v608 = vunpack.c.l.b16 %v500
  %v609 = vunpack.c.l.b16 %v501
  %v610 = vunpack.c.l.b16 %v502
  %v611 = vunpack.c.l.b16 %v503
  %v612 = vunpack.c.l.b16 %v504
  %v613 = vunpack.c.l.b16 %v505
  %v614 = vunpack.c.l.b16 %v506
  %v615 = vunpack.c.l.b16 %v507
  %v616 = vunpack.c.l.b16 %v508
  %v617 = vunpack.c.l.b16 %v509
  %v618 = vunpack.c.l.b16 %v510
  %v619 = vunpack.c.l.b16 %v511
  %v620 = vunpack.c.l.b16 %v512
  %v621 = vunpack.c.l.b16 %v513
  %v622 = vunpack.c.l.b16 %v514
  %v623 = vpack.c.b16 %v592, %v591
  %v624 = vpack.c.b16 %v594, %v593
  %v625 = vpack.c.b16 %v596, %v595
  %v626 = vpack.c.b16 %v598, %v597
  %v627 = vpack.c.b16 %v600, %v599
  %v628 = vpack.c.b16 %v602, %v601
  %v629 = vpack.c.b16 %v604, %v603
  %v630 = vpack.c.b16 %v606, %v605
  %v631 = vpack.c.b16 %v608, %v607
  %v632 = vpack.c.b16 %v610, %v609
  %v633 = vpack.c.b16 %v612, %v611
  %v634 = vpack.c.b16 %v614, %v613
  %v635 = vpack.c.b16 %v616, %v615
  %v636 = vpack.c.b16 %v618, %v617
  %v637 = vpack.c.b16 %v620, %v619
  %v638 = vpack.c.b16 %v622, %v621
  %655 = vmatpush.bf16.msra.mxu0 %v630
  %656 = vmatpush.bf16.msra.mxu0 %v629
  %657 = vmatpush.bf16.msra.mxu0 %v628
  %658 = vmatpush.bf16.msra.mxu0 %v627
  %659 = vmatpush.bf16.msra.mxu0 %v626
  %660 = vmatpush.bf16.msra.mxu0 %v625
  %661 = vmatpush.bf16.msra.mxu0 %v624
  %662 = vmatpush.bf16.msra.mxu0 %v623
  %663 = vmatmul.bf16.gmra.mxu0 %v543
  %v664 = vpop.f32.mrf.mxu0
  %v665 = vadd.f32 %v517, %v664
  %v666 = vpop.f32.mrf.mxu0
  %v667 = vadd.f32 %v517, %v666
  %668 = vmatmul.bf16.gmra.mxu0 %v545
  %v669 = vpop.f32.mrf.mxu0
  %v670 = vadd.f32 %v517, %v669
  %v671 = vpop.f32.mrf.mxu0
  %v672 = vadd.f32 %v517, %v671
  %673 = vmatmul.bf16.gmra.mxu0 %v547
  %v674 = vpop.f32.mrf.mxu0
  %v675 = vadd.f32 %v517, %v674
  %v676 = vpop.f32.mrf.mxu0
  %v677 = vadd.f32 %v517, %v676
  %678 = vmatmul.bf16.gmra.mxu0 %v549
  %v679 = vpop.f32.mrf.mxu0
  %v680 = vadd.f32 %v517, %v679
  %v681 = vpop.f32.mrf.mxu0
  %v682 = vadd.f32 %v517, %v681
  %683 = vdwg.mxu0
  %684 = vmatpush.bf16.msra.mxu0 %v638
  %685 = vmatpush.bf16.msra.mxu0 %v637
  %686 = vmatpush.bf16.msra.mxu0 %v636
  %687 = vmatpush.bf16.msra.mxu0 %v635
  %688 = vmatpush.bf16.msra.mxu0 %v634
  %689 = vmatpush.bf16.msra.mxu0 %v633
  %690 = vmatpush.bf16.msra.mxu0 %v632
  %691 = vmatpush.bf16.msra.mxu0 %v631
  %692 = vmatmul.bf16.gmra.mxu0 %v544
  %v693 = vpop.f32.mrf.mxu0
  %v694 = vadd.f32 %v665, %v693
  %v695 = vpop.f32.mrf.mxu0
  %v696 = vadd.f32 %v667, %v695
  %697 = vmatmul.bf16.gmra.mxu0 %v546
  %v698 = vpop.f32.mrf.mxu0
  %v699 = vadd.f32 %v670, %v698
  %v700 = vpop.f32.mrf.mxu0
  %v701 = vadd.f32 %v672, %v700
  %702 = vmatmul.bf16.gmra.mxu0 %v548
  %v703 = vpop.f32.mrf.mxu0
  %v704 = vadd.f32 %v675, %v703
  %v705 = vpop.f32.mrf.mxu0
  %v706 = vadd.f32 %v677, %v705
  %707 = vmatmul.bf16.gmra.mxu0 %v550
  %v708 = vpop.f32.mrf.mxu0
  %v709 = vadd.f32 %v680, %v708
  %v710 = vpop.f32.mrf.mxu0
  %v711 = vadd.f32 %v682, %v710
  %712 = vdwg.mxu0
  %v713 = vmax.f32 %v694, 0.0
  %v714 = vmax.f32 %v696, 0.0
  %v715 = vmax.f32 %v699, 0.0
  %v716 = vmax.f32 %v701, 0.0
  %v717 = vmax.f32 %v704, 0.0
  %v718 = vmax.f32 %v706, 0.0
  %v719 = vmax.f32 %v709, 0.0
  %v720 = vmax.f32 %v711, 0.0
  %v721 = vpack.c.bf16 %v713, %v713
  %v722 = vpack.c.bf16 %v714, %v714
  %v723 = vpack.c.bf16 %v715, %v715
  %v724 = vpack.c.bf16 %v716, %v716
  %v725 = vpack.c.bf16 %v717, %v717
  %v726 = vpack.c.bf16 %v718, %v718
  %v727 = vpack.c.bf16 %v719, %v719
  %v728 = vpack.c.bf16 %v720, %v720
  %729 = vst [vmem:[#allocation3] sm:$0xf] %v721
  %730 = vst [vmem:[#allocation3 + $0x10] sm:$0xf] %v722
  %731 = vst [vmem:[#allocation3 + $0x4] sm:$0xf] %v723
  %732 = vst [vmem:[#allocation3 + $0x14] sm:$0xf] %v724
  %733 = vst [vmem:[#allocation3 + $0x8] sm:$0xf] %v725
  %734 = vst [vmem:[#allocation3 + $0x18] sm:$0xf] %v726
  %735 = vst [vmem:[#allocation3 + $0xc] sm:$0xf] %v727
  %736 = vst [vmem:[#allocation3 + $0x1c] sm:$0xf] %v728
  %v737 = vld [vmem:[#allocation3] sm:$0xff]
  %v738 = vld [vmem:[#allocation3 + $0x8] sm:$0xff]
  %v739 = vld [vmem:[#allocation3 + $0x10] sm:$0xff]
  %v740 = vld [vmem:[#allocation3 + $0x18] sm:$0xff]
  %v741 = vld [vmem:[%s5] sm:$0xf]
  %v742 = vld [vmem:[%s5 + $0x4] sm:$0xf]
  %v743 = vld [vmem:[%s5 + $0x8] sm:$0xf]
  %v744 = vld [vmem:[%s5 + $0xc] sm:$0xf]
  %v745 = vld [vmem:[%s5 + $0x10] sm:$0xf]
  %v746 = vld [vmem:[%s5 + $0x14] sm:$0xf]
  %v747 = vld [vmem:[%s5 + $0x18] sm:$0xf]
  %v748 = vld [vmem:[%s5 + $0x1c] sm:$0xf]
  %v749 = vld [vmem:[%s5 + $0x20] sm:$0xf]
  %v750 = vld [vmem:[%s5 + $0x24] sm:$0xf]
  %v751 = vld [vmem:[%s5 + $0x28] sm:$0xf]
  %v752 = vld [vmem:[%s5 + $0x2c] sm:$0xf]
  %v753 = vld [vmem:[%s5 + $0x30] sm:$0xf]
  %v754 = vld [vmem:[%s5 + $0x34] sm:$0xf]
  %v755 = vld [vmem:[%s5 + $0x38] sm:$0xf]
  %v756 = vld [vmem:[%s5 + $0x3c] sm:$0xf]
  %v757 = vld [vmem:[%s5 + $0x40] sm:$0xf]
  %v758 = vld [vmem:[%s5 + $0x44] sm:$0xf]
  %v759 = vld [vmem:[%s5 + $0x48] sm:$0xf]
  %v760 = vld [vmem:[%s5 + $0x4c] sm:$0xf]
  %v761 = vld [vmem:[%s5 + $0x50] sm:$0xf]
  %v762 = vld [vmem:[%s5 + $0x54] sm:$0xf]
  %v763 = vld [vmem:[%s5 + $0x58] sm:$0xf]
  %v764 = vld [vmem:[%s5 + $0x5c] sm:$0xf]
  %v765 = vld [vmem:[%s5 + $0x60] sm:$0xf]
  %v766 = vld [vmem:[%s5 + $0x64] sm:$0xf]
  %v767 = vld [vmem:[%s5 + $0x68] sm:$0xf]
  %v768 = vld [vmem:[%s5 + $0x6c] sm:$0xf]
  %v769 = vld [vmem:[%s5 + $0x70] sm:$0xf]
  %v770 = vld [vmem:[%s5 + $0x74] sm:$0xf]
  %v771 = vld [vmem:[%s5 + $0x78] sm:$0xf]
  %v772 = vld [vmem:[%s5 + $0x7c] sm:$0xf]
  %v773 = vld [vmem:[%s5 + $0x80] sm:$0xf]
  %v774 = vld [vmem:[%s5 + $0x84] sm:$0xf]
  %v775 = vld [vmem:[%s5 + $0x88] sm:$0xf]
  %v776 = vld [vmem:[%s5 + $0x8c] sm:$0xf]
  %v777 = vld [vmem:[%s5 + $0x90] sm:$0xf]
  %v778 = vld [vmem:[%s5 + $0x94] sm:$0xf]
  %v779 = vld [vmem:[%s5 + $0x98] sm:$0xf]
  %v780 = vld [vmem:[%s5 + $0x9c] sm:$0xf]
  %v781 = vld [vmem:[%s5 + $0xa0] sm:$0xf]
  %v782 = vld [vmem:[%s5 + $0xa4] sm:$0xf]
  %v783 = vld [vmem:[%s5 + $0xa8] sm:$0xf]
  %v784 = vld [vmem:[%s5 + $0xac] sm:$0xf]
  %v785 = vld [vmem:[%s5 + $0xb0] sm:$0xf]
  %v786 = vld [vmem:[%s5 + $0xb4] sm:$0xf]
  %v787 = vld [vmem:[%s5 + $0xb8] sm:$0xf]
  %v788 = vld [vmem:[%s5 + $0xbc] sm:$0xf]
  %v789 = vld [vmem:[%s5 + $0xc0] sm:$0xf]
  %v790 = vld [vmem:[%s5 + $0xc4] sm:$0xf]
  %v791 = vld [vmem:[%s5 + $0xc8] sm:$0xf]
  %v792 = vld [vmem:[%s5 + $0xcc] sm:$0xf]
  %v793 = vld [vmem:[%s5 + $0xd0] sm:$0xf]
  %v794 = vld [vmem:[%s5 + $0xd4] sm:$0xf]
  %v795 = vld [vmem:[%s5 + $0xd8] sm:$0xf]
  %v796 = vld [vmem:[%s5 + $0xdc] sm:$0xf]
  %v797 = vld [vmem:[%s5 + $0xe0] sm:$0xf]
  %v798 = vld [vmem:[%s5 + $0xe4] sm:$0xf]
  %v799 = vld [vmem:[%s5 + $0xe8] sm:$0xf]
  %v800 = vld [vmem:[%s5 + $0xec] sm:$0xf]
  %v801 = vld [vmem:[%s5 + $0xf0] sm:$0xf]
  %v802 = vld [vmem:[%s5 + $0xf4] sm:$0xf]
  %v803 = vld [vmem:[%s5 + $0xf8] sm:$0xf]
  %v804 = vld [vmem:[%s5 + $0xfc] sm:$0xf]
  %v805 = vld [vmem:[%s6] sm:$0x1]
  %v807 = vperm.slane %v805, 0
  %v813 = vunpack.c.l.b16 %v737
  %v814 = vunpack.c.h.b16 %v737
  %v815 = vunpack.c.l.b16 %v738
  %v816 = vunpack.c.h.b16 %v738
  %v817 = vunpack.c.l.b16 %v739
  %v818 = vunpack.c.h.b16 %v739
  %v819 = vunpack.c.l.b16 %v740
  %v820 = vunpack.c.h.b16 %v740
  %v821 = vpack.c.b16 %v817, %v813
  %v822 = vpack.c.b16 %v818, %v814
  %v823 = vpack.c.b16 %v819, %v815
  %v824 = vpack.c.b16 %v820, %v816
  %v893 = vunpack.c.l.b16 %v741
  %v894 = vunpack.c.l.b16 %v742
  %v895 = vunpack.c.l.b16 %v743
  %v896 = vunpack.c.l.b16 %v744
  %v897 = vunpack.c.l.b16 %v745
  %v898 = vunpack.c.l.b16 %v746
  %v899 = vunpack.c.l.b16 %v747
  %v900 = vunpack.c.l.b16 %v748
  %v901 = vunpack.c.l.b16 %v749
  %v902 = vunpack.c.l.b16 %v750
  %v903 = vunpack.c.l.b16 %v751
  %v904 = vunpack.c.l.b16 %v752
  %v905 = vunpack.c.l.b16 %v753
  %v906 = vunpack.c.l.b16 %v754
  %v907 = vunpack.c.l.b16 %v755
  %v908 = vunpack.c.l.b16 %v756
  %v909 = vunpack.c.l.b16 %v757
  %v910 = vunpack.c.l.b16 %v758
  %v911 = vunpack.c.l.b16 %v759
  %v912 = vunpack.c.l.b16 %v760
  %v913 = vunpack.c.l.b16 %v761
  %v914 = vunpack.c.l.b16 %v762
  %v915 = vunpack.c.l.b16 %v763
  %v916 = vunpack.c.l.b16 %v764
  %v917 = vunpack.c.l.b16 %v765
  %v918 = vunpack.c.l.b16 %v766
  %v919 = vunpack.c.l.b16 %v767
  %v920 = vunpack.c.l.b16 %v768
  %v921 = vunpack.c.l.b16 %v769
  %v922 = vunpack.c.l.b16 %v770
  %v923 = vunpack.c.l.b16 %v771
  %v924 = vunpack.c.l.b16 %v772
  %v925 = vunpack.c.l.b16 %v773
  %v926 = vunpack.c.l.b16 %v774
  %v927 = vunpack.c.l.b16 %v775
  %v928 = vunpack.c.l.b16 %v776
  %v929 = vunpack.c.l.b16 %v777
  %v930 = vunpack.c.l.b16 %v778
  %v931 = vunpack.c.l.b16 %v779
  %v932 = vunpack.c.l.b16 %v780
  %v933 = vunpack.c.l.b16 %v781
  %v934 = vunpack.c.l.b16 %v782
  %v935 = vunpack.c.l.b16 %v783
  %v936 = vunpack.c.l.b16 %v784
  %v937 = vunpack.c.l.b16 %v785
  %v938 = vunpack.c.l.b16 %v786
  %v939 = vunpack.c.l.b16 %v787
  %v940 = vunpack.c.l.b16 %v788
  %v941 = vunpack.c.l.b16 %v789
  %v942 = vunpack.c.l.b16 %v790
  %v943 = vunpack.c.l.b16 %v791
  %v944 = vunpack.c.l.b16 %v792
  %v945 = vunpack.c.l.b16 %v793
  %v946 = vunpack.c.l.b16 %v794
  %v947 = vunpack.c.l.b16 %v795
  %v948 = vunpack.c.l.b16 %v796
  %v949 = vunpack.c.l.b16 %v797
  %v950 = vunpack.c.l.b16 %v798
  %v951 = vunpack.c.l.b16 %v799
  %v952 = vunpack.c.l.b16 %v800
  %v953 = vunpack.c.l.b16 %v801
  %v954 = vunpack.c.l.b16 %v802
  %v955 = vunpack.c.l.b16 %v803
  %v956 = vunpack.c.l.b16 %v804
  %v957 = vpack.c.b16 %v894, %v893
  %v958 = vpack.c.b16 %v896, %v895
  %v959 = vpack.c.b16 %v898, %v897
  %v960 = vpack.c.b16 %v900, %v899
  %v961 = vpack.c.b16 %v902, %v901
  %v962 = vpack.c.b16 %v904, %v903
  %v963 = vpack.c.b16 %v906, %v905
  %v964 = vpack.c.b16 %v908, %v907
  %v965 = vpack.c.b16 %v910, %v909
  %v966 = vpack.c.b16 %v912, %v911
  %v967 = vpack.c.b16 %v914, %v913
  %v968 = vpack.c.b16 %v916, %v915
  %v969 = vpack.c.b16 %v918, %v917
  %v970 = vpack.c.b16 %v920, %v919
  %v971 = vpack.c.b16 %v922, %v921
  %v972 = vpack.c.b16 %v924, %v923
  %v973 = vpack.c.b16 %v926, %v925
  %v974 = vpack.c.b16 %v928, %v927
  %v975 = vpack.c.b16 %v930, %v929
  %v976 = vpack.c.b16 %v932, %v931
  %v977 = vpack.c.b16 %v934, %v933
  %v978 = vpack.c.b16 %v936, %v935
  %v979 = vpack.c.b16 %v938, %v937
  %v980 = vpack.c.b16 %v940, %v939
  %v981 = vpack.c.b16 %v942, %v941
  %v982 = vpack.c.b16 %v944, %v943
  %v983 = vpack.c.b16 %v946, %v945
  %v984 = vpack.c.b16 %v948, %v947
  %v985 = vpack.c.b16 %v950, %v949
  %v986 = vpack.c.b16 %v952, %v951
  %v987 = vpack.c.b16 %v954, %v953
  %v988 = vpack.c.b16 %v956, %v955
  %1021 = vmatpush.bf16.msra.mxu0 %v964
  %1022 = vmatpush.bf16.msra.mxu0 %v963
  %1023 = vmatpush.bf16.msra.mxu0 %v962
  %1024 = vmatpush.bf16.msra.mxu0 %v961
  %1025 = vmatpush.bf16.msra.mxu0 %v960
  %1026 = vmatpush.bf16.msra.mxu0 %v959
  %1027 = vmatpush.bf16.msra.mxu0 %v958
  %1028 = vmatpush.bf16.msra.mxu0 %v957
  %1029 = vmatmul.bf16.gmra.mxu0 %v821
  %v1030 = vpop.f32.mrf.mxu0
  %v1031 = vadd.f32 %v807, %v1030
  %v1032 = vpop.f32.mrf.mxu0
  %v1033 = vadd.f32 %v807, %v1032
  %1034 = vdwg.mxu0
  %1035 = vmatpush.bf16.msra.mxu0 %v972
  %1036 = vmatpush.bf16.msra.mxu0 %v971
  %1037 = vmatpush.bf16.msra.mxu0 %v970
  %1038 = vmatpush.bf16.msra.mxu0 %v969
  %1039 = vmatpush.bf16.msra.mxu0 %v968
  %1040 = vmatpush.bf16.msra.mxu0 %v967
  %1041 = vmatpush.bf16.msra.mxu0 %v966
  %1042 = vmatpush.bf16.msra.mxu0 %v965
  %1043 = vmatmul.bf16.gmra.mxu0 %v822
  %v1044 = vpop.f32.mrf.mxu0
  %v1045 = vadd.f32 %v1031, %v1044
  %v1046 = vpop.f32.mrf.mxu0
  %v1047 = vadd.f32 %v1033, %v1046
  %1048 = vdwg.mxu0
  %1049 = vmatpush.bf16.msra.mxu0 %v980
  %1050 = vmatpush.bf16.msra.mxu0 %v979
  %1051 = vmatpush.bf16.msra.mxu0 %v978
  %1052 = vmatpush.bf16.msra.mxu0 %v977
  %1053 = vmatpush.bf16.msra.mxu0 %v976
  %1054 = vmatpush.bf16.msra.mxu0 %v975
  %1055 = vmatpush.bf16.msra.mxu0 %v974
  %1056 = vmatpush.bf16.msra.mxu0 %v973
  %1057 = vmatmul.bf16.gmra.mxu0 %v823
  %v1058 = vpop.f32.mrf.mxu0
  %v1059 = vadd.f32 %v1045, %v1058
  %v1060 = vpop.f32.mrf.mxu0
  %v1061 = vadd.f32 %v1047, %v1060
  %1062 = vdwg.mxu0
  %1063 = vmatpush.bf16.msra.mxu0 %v988
  %1064 = vmatpush.bf16.msra.mxu0 %v987
  %1065 = vmatpush.bf16.msra.mxu0 %v986
  %1066 = vmatpush.bf16.msra.mxu0 %v985
  %1067 = vmatpush.bf16.msra.mxu0 %v984
  %1068 = vmatpush.bf16.msra.mxu0 %v983
  %1069 = vmatpush.bf16.msra.mxu0 %v982
  %1070 = vmatpush.bf16.msra.mxu0 %v981
  %1071 = vmatmul.bf16.gmra.mxu0 %v824
  %v1072 = vpop.f32.mrf.mxu0
  %v1073 = vadd.f32 %v1059, %v1072
  %v1074 = vpop.f32.mrf.mxu0
  %v1075 = vadd.f32 %v1061, %v1074
  %1076 = vdwg.mxu0
  %v1077 = vmax.f32 %v1073, 0.0
  %v1078 = vmax.f32 %v1075, 0.0
  %v1079 = vld [vmem:[%s7] sm:$0x1]
  %v1081 = vperm.slane %v1079, 0
  %v1083 = vmul.f32 %v1077, %v1081
  %v1084 = vmul.f32 %v1078, %v1081
  %1085 = vadd.xlane.f32.xlu0 %v1083
  %v1086 = vpop.xlane.xlu0 %1085
  %1087 = vadd.xlane.f32.xlu0 %v1084
  %v1088 = vpop.xlane.xlu0 %1087
  %v1089 = vld [vmem:[#allocation4] sm:$0x1]
  %v1091 = vperm.slane %v1089, 0
  %v1093 = vadd.f32 %v1086, %v1091
  %v1094 = vadd.f32 %v1088, %v1091
  %vm1095 = vcmask 7168
  %1096 = vst.msk [vmem:[%s9] sm:$0xff] %vm1095, %v1093
  %1097 = vst.msk [vmem:[%s9 + $0x8] sm:$0xff] %vm1095, %v1094
  // Predicated region
  $region38: #{chess_cnn_forward.1} parent=0 // pred_check
    _
  $region39: #{chess_cnn_forward.1} parent=0 // pred_check_branch
    %1099 = sbr.rel (0) target = $region41
  $region40: #{chess_cnn_forward.1} parent=0 // pred_region
    _
  $region41: #{chess_cnn_forward.1} parent=0 // pred_fallthru
    _
  // Predicated region
  $region42: #{chess_cnn_forward.1} parent=0 // pred_check
    _
  $region43: #{chess_cnn_forward.1} parent=0 // pred_check_branch
    %1101 = sbr.rel (0) target = $region45
  $region44: #{chess_cnn_forward.1} parent=0 // pred_region
    _
  $region45: #{chess_cnn_forward.1} parent=0 // pred_fallthru
    _

</llo_original>
